<compile_context>
chip_gen: v5e
topology: v5e:2x2
jax: 0.10.0
libtpu: 0.0.40
codegen_flags: <defaults>
</compile_context>

<pallas_src>
import functools
import math

import numpy as np
import jax
import jax.numpy as jnp
from jax.experimental import pallas as pl
from jax.experimental.pallas import tpu as pltpu


# ----------------------------------------------------------------------------
# static filter weights (computed at trace time)
# ----------------------------------------------------------------------------
def _gaussian_kernel1d(ksize: int, sigma: float) -> np.ndarray:
    # kornia.filters.get_gaussian_kernel1d
    xs = np.arange(ksize, dtype=np.float64) - ksize // 2
    if ksize % 2 == 0:
        xs = xs + 0.5
    g = np.exp(-(xs ** 2) / (2.0 * sigma * sigma))
    return g / g.sum()


def _filter_weights_1d(filter_type: str, ksize: int, H: int, W: int):
    """Separable 1-D taps (fy over H, fx over W) as static Python floats."""
    if filter_type == "Mean_Filter":
        f = tuple(1.0 / ksize for _ in range(ksize))
        return f, f
    if filter_type == "Gaussian_Filter":
        # sigma tuple exactly as in the PyTorch forward:
        #   (0.3*((W-1)*0.5-1)+0.8, 0.3*((H-1)*0.5-1)+0.8)
        # NOTE: sigma-from-W is applied along W and sigma-from-H along H
        # (old-kornia get_gaussian_kernel2d convention); indistinguishable from
        # the swapped convention when H == W, as in this test.
        sigma_x = 0.3 * ((W - 1) * 0.5 - 1) + 0.8
        sigma_y = 0.3 * ((H - 1) * 0.5 - 1) + 0.8
        gy = tuple(float(v) for v in _gaussian_kernel1d(ksize, sigma_y))
        gx = tuple(float(v) for v in _gaussian_kernel1d(ksize, sigma_x))
        return gy, gx
    if filter_type == "Median_Filter":
        return None, None
    raise ValueError(filter_type)


def _filter_weights_2d(filter_type: str, ksize: int, H: int, W: int):
    if filter_type == "Median_Filter":
        return None
    fy, fx = _filter_weights_1d(filter_type, ksize, H, W)
    return np.outer(np.asarray(fy, np.float64),
                    np.asarray(fx, np.float64)).astype(np.float32)


# ----------------------------------------------------------------------------
# boundary handling folded into per-position weight maps / masks (NumPy)
# ----------------------------------------------------------------------------
def _reflect_index(i: int, n: int) -> int:
    # 'reflect' without edge repeat (matches jnp.pad / torch 'reflect')
    if n == 1:
        return 0
    period = 2 * (n - 1)
    i = i % period
    return period - i if i >= n else i


def _fold_reflect_weights(f1d, size: int, pad: int) -> np.ndarray:
    """M[t, r]: weight applied to source index r + (t - pad) for output r,
    with 'reflect' boundary handling folded into the taps."""
    k = len(f1d)
    m = np.zeros((k, size), np.float32)
    for r in range(size):
        for j in range(k):
            src = _reflect_index(r + j - pad, size)
            m[src - r + pad, r] += f1d[j]
    return m


def _boundary_maps(filter_type: str, ksize: int, H: int, W: int):
    """Returns (vmap (k, H*W+2*pad), hmap (k, H*W)) float32 arrays."""
    pad = ksize // 2
    N = H * W
    if filter_type == "Median_Filter":
        # 0/1 masks that zero the columns whose horizontal tap wraps into the
        # neighbouring row (zero padding); vertical OOB taps hit the zero slack.
        col = np.tile(np.arange(W), H)
        hmap = np.zeros((ksize, N), np.float32)
        for dj in range(ksize):
            hmap[dj] = ((col + dj - pad >= 0) &
                        (col + dj - pad < W)).astype(np.float32)
        vmap = np.zeros((ksize, N + 2 * pad), np.float32)   # unused by median
        return vmap, hmap
    fy, fx = _filter_weights_1d(filter_type, ksize, H, W)
    vrow = _fold_reflect_weights(fy, H, pad)                 # (k, H)
    vmap = np.zeros((ksize, N + 2 * pad), np.float32)
    vmap[:, pad:pad + N] = np.repeat(vrow, W, axis=1)        # per flat pos: row map
    hcol = _fold_reflect_weights(fx, W, pad)                 # (k, W)
    hmap = np.tile(hcol, (1, H))                             # per flat pos: col map
    return vmap, hmap


# ----------------------------------------------------------------------------
# median selection network
# ----------------------------------------------------------------------------
def _cas(vals, i, j):
    a, b = vals[i], vals[j]
    vals[i] = jnp.minimum(a, b)
    vals[j] = jnp.maximum(a, b)


# Paeth's optimal 19-exchange median-of-9 network (Graphics Gems).
_MED9_NET = ((1, 2), (4, 5), (7, 8), (0, 1), (3, 4), (6, 7),
             (1, 2), (4, 5), (7, 8), (0, 3), (5, 8), (4, 7),
             (3, 6), (1, 4), (2, 5), (4, 7), (4, 2), (6, 4), (4, 2))


def _median_of_window(vals):
    n = len(vals)
    if n == 9:
        for i, j in _MED9_NET:
            _cas(vals, i, j)
        return vals[4]
    # Generic odd-n fallback: partial bubble sort.  After (n+1)//2 passes the
    # element at index n//2 (the median) is in its sorted position, ~25% fewer
    # CAS than a full sort.
    # TODO(synk): replace with a proper median selection network before k > 3.
    for p in range((n + 1) // 2):
        for j in range(n - 1 - p):
            _cas(vals, j, j + 1)
    return vals[n // 2]


# ----------------------------------------------------------------------------
# Pallas kernel
# ----------------------------------------------------------------------------
def _denoise_kernel(x_ref, vmap_ref, hmap_ref, w_ref, b_ref, out_ref, xe_ref, *,
                    filter_type, ksize, H, W, C, pad, slack):
    # x_ref    : (C, N)           VMEM, lane-dense flat image (one batch elem)
    # vmap_ref : (k, N + 2*pad)   VMEM, folded vertical reflect weights
    # hmap_ref : (k, N)           VMEM, folded horizontal weights / 0-1 masks
    # w_ref    : (C, C)           VMEM, 1x1-conv weight  w[co, ci]
    # b_ref    : (C, 1)           VMEM, 1x1-conv bias
    # out_ref  : (C, N)           VMEM, lane-dense output
    # xe_ref   : (C, N + 2*slack) VMEM scratch, zero-slacked flat image
    N = H * W
    n2p = N + 2 * pad
    base = slack - (pad * W + pad)       # >= 0; slack is 128-aligned

    xv = x_ref[...]                                        # (C, N)

    # in-kernel padding: zero slack (covers zero-pad semantics + OOB slices);
    # interior store at a lane-aligned offset.
    xe_ref[...] = jnp.zeros_like(xe_ref)
    xe_ref[:, slack:slack + N] = xv

    if filter_type == "Median_Filter":
        # 9 channel-vectorized window taps; wrapped columns zeroed by hmap.
        taps = []
        for di in range(ksize):
            for dj in range(ksize):
                off = base + di * W + dj
                t = xe_ref[:, off:off + N]                 # (C, N)
                if dj != pad:
                    t = t * hmap_ref[dj:dj + 1, :]
                taps.append(t)
        blur = _median_of_window(taps)                     # (C, N)
    else:
        # Separable blur, reflect padding folded into per-position weights.
        # Column pass extended by `pad` on each side so the row pass can take
        # plain flat slices; out-of-image positions carry zero weight.
        colp = vmap_ref[0:1, :] * xe_ref[:, base:base + n2p]
        for t in range(1, ksize):
            off = base + t * W
            colp = colp + vmap_ref[t:t + 1, :] * xe_ref[:, off:off + n2p]
        blur = hmap_ref[0:1, :] * colp[:, 0:N]
        for s in range(1, ksize):
            blur = blur + hmap_ref[s:s + 1, :] * colp[:, s:s + N]

    # residual + 1x1 conv: C broadcast FMAs on full-lane (C, N) tensors (VPU).
    acc = xv + b_ref[...]                                  # (C,N) + (C,1)
    for ci in range(C):
        acc = acc + w_ref[:, ci:ci + 1] * blur[ci:ci + 1, :]
    out_ref[...] = acc


# ----------------------------------------------------------------------------
# wrapper (NCHW in / NCHW out, matching the PyTorch module)
# ----------------------------------------------------------------------------
def denoising_block_forward(x_nchw, conv_w, conv_b, ksize, filter_type):
    assert ksize % 2 == 1, "denoising_block: only odd ksize is supported"
    B, C, H, W = x_nchw.shape
    pad = ksize // 2
    N = H * W
    n2p = N + 2 * pad
    if filter_type != "Median_Filter":
        assert pad < H and pad < W, "reflect padding needs ksize//2 < min(H, W)"

    # lane-dense flat view; collapsing trailing contiguous dims is free in XLA
    x_flat = x_nchw.astype(jnp.float32).reshape(B, C, N)

    vmap_np, hmap_np = _boundary_maps(filter_type, ksize, H, W)
    vmap = jnp.asarray(vmap_np)                     # (k, N + 2*pad)
    hmap = jnp.asarray(hmap_np)                     # (k, N)
    w2 = conv_w.reshape(C, C).astype(jnp.float32)   # w[co, ci]
    b2 = conv_b.reshape(C, 1).astype(jnp.float32)

    # slack (>= pad*W + pad) rounded up to 128 so the interior scratch store is
    # lane-aligned; the zero slack also realizes the zero padding of the median.
    slack = ((pad * W + pad + 127) // 128) * 128
    L = N + 2 * slack

    kernel = functools.partial(_denoise_kernel, filter_type=filter_type,
                               ksize=ksize, H=H, W=W, C=C, pad=pad, slack=slack)

    out = pl.pallas_call(
        kernel,
        out_shape=jax.ShapeDtypeStruct((B, C, N), jnp.float32),
        grid=(B,),
        in_specs=[
            pl.BlockSpec((None, C, N), lambda b: (b, 0, 0)),
            pl.BlockSpec((ksize, n2p), lambda b: (0, 0)),
            pl.BlockSpec((ksize, N), lambda b: (0, 0)),
            pl.BlockSpec((C, C), lambda b: (0, 0)),
            pl.BlockSpec((C, 1), lambda b: (0, 0)),
        ],
        out_specs=pl.BlockSpec((None, C, N), lambda b: (b, 0, 0)),
        scratch_shapes=[pltpu.VMEM((C, L), jnp.float32)],
        compiler_params=pltpu.CompilerParams(dimension_semantics=("parallel",)),
    )(x_flat, vmap, hmap, w2, b2)

    return out.reshape(B, C, H, W)


# ----------------------------------------------------------------------------
# pure-JAX reference (same math) for validation
# ----------------------------------------------------------------------------
def _reference_forward(x_nchw, conv_w, conv_b, ksize, filter_type):
    B, C, H, W = x_nchw.shape
    pad = ksize // 2
    x = x_nchw.astype(jnp.float32)
    if filter_type == "Median_Filter":
        xp = jnp.pad(x, ((0, 0), (0, 0), (pad, pad), (pad, pad)))
    else:
        xp = jnp.pad(x, ((0, 0), (0, 0), (pad, pad), (pad, pad)), mode="reflect")
    windows = jnp.stack([xp[:, :, di:di + H, dj:dj + W]
                         for di in range(ksize) for dj in range(ksize)], axis=0)
    if filter_type == "Median_Filter":
        blurred = jnp.median(windows, axis=0)
    else:
        fw = jnp.asarray(_filter_weights_2d(filter_type, ksize, H, W).reshape(-1))
        blurred = jnp.einsum("k,kbchw->bchw", fw, windows, precision="highest")
    conv = jnp.einsum("oc,bchw->bohw",
                      conv_w.reshape(C, C).astype(jnp.float32), blurred,
                      precision="highest") + conv_b.reshape(1, C, 1, 1)
    return x + conv


# ----------------------------------------------------------------------------
if __name__ == "__main__":
    key = jax.random.PRNGKey(0)
    kx, kw, kb = jax.random.split(key, 3)

    B, C, H, W = 2, 4, 16, 16        # in_planes = 4
    ksize = 3

    x = jax.random.normal(kx, (B, C, H, W), dtype=jnp.float32)
    # deterministic Conv2d(in_planes, in_planes, 1) params (uniform +/- 1/sqrt(fan_in))
    bound = 1.0 / math.sqrt(C)
    conv_w = jax.random.uniform(kw, (C, C, 1, 1), jnp.float32, -bound, bound)
    conv_b = jax.random.uniform(kb, (C,), jnp.float32, -bound, bound)

    for ft in ("Mean_Filter", "Gaussian_Filter", "Median_Filter"):
        out = denoising_block_forward(x, conv_w, conv_b, ksize, ft)
        out = jax.block_until_ready(out)
        assert out.shape == (B, C, H, W) and out.dtype == jnp.float32
        ref = _reference_forward(x, conv_w, conv_b, ksize, ft)
        err = float(jnp.max(jnp.abs(out - ref)))
        assert err < 1e-4, (ft, err)

    print("KERNEL_OK")
</pallas_src>

<mosaic_0001>
module attributes {stable_mosaic.version = 11 : i64} {
  func.func @_denoise_kernel(%arg0: i32, %arg1: memref<1x4x256xf32, #tpu.memory_space<vmem>>, %arg2: memref<3x258xf32, #tpu.memory_space<vmem>>, %arg3: memref<3x256xf32, #tpu.memory_space<vmem>>, %arg4: memref<4x4xf32, #tpu.memory_space<vmem>>, %arg5: memref<4x1xf32, #tpu.memory_space<vmem>>, %arg6: memref<1x4x256xf32, #tpu.memory_space<vmem>>, %arg7: memref<4x512xf32, #tpu.memory_space<vmem>>) attributes {dimension_semantics = [#tpu.dimension_semantics<parallel>], iteration_bounds = array<i64: 2>, scalar_prefetch = 0 : i64, scratch_operands = 1 : i64, tpu.core_type = #tpu.core_type<tc>, window_params = [{transform_indices = @transform_0, window_bounds = array<i64: 1, 4, 256>}, {pipeline_mode = #tpu.pipeline_mode<synchronous>, transform_indices = @transform_1, window_bounds = array<i64: 3, 258>}, {pipeline_mode = #tpu.pipeline_mode<synchronous>, transform_indices = @transform_2, window_bounds = array<i64: 3, 256>}, {pipeline_mode = #tpu.pipeline_mode<synchronous>, transform_indices = @transform_3, window_bounds = array<i64: 4, 4>}, {pipeline_mode = #tpu.pipeline_mode<synchronous>, transform_indices = @transform_4, window_bounds = array<i64: 4, 1>}, {transform_indices = @transform_5, window_bounds = array<i64: 1, 4, 256>}]} {
    %c0 = arith.constant 0 : index
    %c0_0 = arith.constant 0 : index
    %c0_1 = arith.constant 0 : index
    %0 = vector.load %arg1[%c0, %c0_0, %c0_1] : memref<1x4x256xf32, #tpu.memory_space<vmem>>, vector<1x4x256xf32>
    %1 = vector.shape_cast %0 : vector<1x4x256xf32> to vector<4x256xf32>
    %cst = arith.constant 0.000000e+00 : f32
    %2 = vector.broadcast %cst : f32 to vector<4x512xf32>
    %c0_2 = arith.constant 0 : index
    %c0_3 = arith.constant 0 : index
    %3 = vector.load %arg7[%c0_2, %c0_3] : memref<4x512xf32, #tpu.memory_space<vmem>>, vector<4x512xf32>
    tpu.vector_store %arg7[%c0_2, %c0_3], %2 {strides = array<i32>} : memref<4x512xf32, #tpu.memory_space<vmem>>, vector<4x512xf32>,
    %c0_4 = arith.constant 0 : index
    %c128 = arith.constant 128 : index
    %4 = vector.load %arg7[%c0_4, %c128] : memref<4x512xf32, #tpu.memory_space<vmem>>, vector<4x256xf32>
    tpu.vector_store %arg7[%c0_4, %c128], %1 {strides = array<i32>} : memref<4x512xf32, #tpu.memory_space<vmem>>, vector<4x256xf32>,
    %c0_5 = arith.constant 0 : index
    %c0_6 = arith.constant 0 : index
    %5 = vector.load %arg2[%c0_5, %c0_6] : memref<3x258xf32, #tpu.memory_space<vmem>>, vector<1x258xf32>
    %c0_7 = arith.constant 0 : index
    %c111 = arith.constant 111 : index
    %6 = vector.load %arg7[%c0_7, %c111] : memref<4x512xf32, #tpu.memory_space<vmem>>, vector<4x258xf32>
    %7 = vector.broadcast %5 : vector<1x258xf32> to vector<4x258xf32>
    %8 = arith.mulf %7, %6 : vector<4x258xf32>
    %c1 = arith.constant 1 : index
    %c0_8 = arith.constant 0 : index
    %9 = vector.load %arg2[%c1, %c0_8] : memref<3x258xf32, #tpu.memory_space<vmem>>, vector<1x258xf32>
    %c0_9 = arith.constant 0 : index
    %c127 = arith.constant 127 : index
    %10 = vector.load %arg7[%c0_9, %c127] : memref<4x512xf32, #tpu.memory_space<vmem>>, vector<4x258xf32>
    %11 = vector.broadcast %9 : vector<1x258xf32> to vector<4x258xf32>
    %12 = arith.mulf %11, %10 : vector<4x258xf32>
    %13 = arith.addf %8, %12 : vector<4x258xf32>
    %c2 = arith.constant 2 : index
    %c0_10 = arith.constant 0 : index
    %14 = vector.load %arg2[%c2, %c0_10] : memref<3x258xf32, #tpu.memory_space<vmem>>, vector<1x258xf32>
    %c0_11 = arith.constant 0 : index
    %c143 = arith.constant 143 : index
    %15 = vector.load %arg7[%c0_11, %c143] : memref<4x512xf32, #tpu.memory_space<vmem>>, vector<4x258xf32>
    %16 = vector.broadcast %14 : vector<1x258xf32> to vector<4x258xf32>
    %17 = arith.mulf %16, %15 : vector<4x258xf32>
    %18 = arith.addf %13, %17 : vector<4x258xf32>
    %c0_12 = arith.constant 0 : index
    %c0_13 = arith.constant 0 : index
    %19 = vector.load %arg3[%c0_12, %c0_13] : memref<3x256xf32, #tpu.memory_space<vmem>>, vector<1x256xf32>
    %20 = vector.extract_strided_slice %18 {offsets = [0, 0], sizes = [4, 256], strides = [1, 1]} : vector<4x258xf32> to vector<4x256xf32>
    %21 = vector.broadcast %19 : vector<1x256xf32> to vector<4x256xf32>
    %22 = arith.mulf %21, %20 : vector<4x256xf32>
    %c1_14 = arith.constant 1 : index
    %c0_15 = arith.constant 0 : index
    %23 = vector.load %arg3[%c1_14, %c0_15] : memref<3x256xf32, #tpu.memory_space<vmem>>, vector<1x256xf32>
    %24 = vector.extract_strided_slice %18 {offsets = [0, 1], sizes = [4, 256], strides = [1, 1]} : vector<4x258xf32> to vector<4x256xf32>
    %25 = vector.broadcast %23 : vector<1x256xf32> to vector<4x256xf32>
    %26 = arith.mulf %25, %24 : vector<4x256xf32>
    %27 = arith.addf %22, %26 : vector<4x256xf32>
    %c2_16 = arith.constant 2 : index
    %c0_17 = arith.constant 0 : index
    %28 = vector.load %arg3[%c2_16, %c0_17] : memref<3x256xf32, #tpu.memory_space<vmem>>, vector<1x256xf32>
    %29 = vector.extract_strided_slice %18 {offsets = [0, 2], sizes = [4, 256], strides = [1, 1]} : vector<4x258xf32> to vector<4x256xf32>
    %30 = vector.broadcast %28 : vector<1x256xf32> to vector<4x256xf32>
    %31 = arith.mulf %30, %29 : vector<4x256xf32>
    %32 = arith.addf %27, %31 : vector<4x256xf32>
    %c0_18 = arith.constant 0 : index
    %c0_19 = arith.constant 0 : index
    %33 = vector.load %arg5[%c0_18, %c0_19] : memref<4x1xf32, #tpu.memory_space<vmem>>, vector<4x1xf32>
    %34 = vector.broadcast %33 : vector<4x1xf32> to vector<4x256xf32>
    %35 = arith.addf %1, %34 : vector<4x256xf32>
    %c0_20 = arith.constant 0 : index
    %c0_21 = arith.constant 0 : index
    %36 = vector.load %arg4[%c0_20, %c0_21] : memref<4x4xf32, #tpu.memory_space<vmem>>, vector<4x1xf32>
    %37 = vector.extract_strided_slice %32 {offsets = [0, 0], sizes = [1, 256], strides = [1, 1]} : vector<4x256xf32> to vector<1x256xf32>
    %38 = vector.broadcast %36 : vector<4x1xf32> to vector<4x256xf32>
    %39 = vector.broadcast %37 : vector<1x256xf32> to vector<4x256xf32>
    %40 = arith.mulf %38, %39 : vector<4x256xf32>
    %41 = arith.addf %35, %40 : vector<4x256xf32>
    %c0_22 = arith.constant 0 : index
    %c1_23 = arith.constant 1 : index
    %42 = vector.load %arg4[%c0_22, %c1_23] : memref<4x4xf32, #tpu.memory_space<vmem>>, vector<4x1xf32>
    %43 = vector.extract_strided_slice %32 {offsets = [1, 0], sizes = [1, 256], strides = [1, 1]} : vector<4x256xf32> to vector<1x256xf32>
    %44 = vector.broadcast %42 : vector<4x1xf32> to vector<4x256xf32>
    %45 = vector.broadcast %43 : vector<1x256xf32> to vector<4x256xf32>
    %46 = arith.mulf %44, %45 : vector<4x256xf32>
    %47 = arith.addf %41, %46 : vector<4x256xf32>
    %c0_24 = arith.constant 0 : index
    %c2_25 = arith.constant 2 : index
    %48 = vector.load %arg4[%c0_24, %c2_25] : memref<4x4xf32, #tpu.memory_space<vmem>>, vector<4x1xf32>
    %49 = vector.extract_strided_slice %32 {offsets = [2, 0], sizes = [1, 256], strides = [1, 1]} : vector<4x256xf32> to vector<1x256xf32>
    %50 = vector.broadcast %48 : vector<4x1xf32> to vector<4x256xf32>
    %51 = vector.broadcast %49 : vector<1x256xf32> to vector<4x256xf32>
    %52 = arith.mulf %50, %51 : vector<4x256xf32>
    %53 = arith.addf %47, %52 : vector<4x256xf32>
    %c0_26 = arith.constant 0 : index
    %c3 = arith.constant 3 : index
    %54 = vector.load %arg4[%c0_26, %c3] : memref<4x4xf32, #tpu.memory_space<vmem>>, vector<4x1xf32>
    %55 = vector.extract_strided_slice %32 {offsets = [3, 0], sizes = [1, 256], strides = [1, 1]} : vector<4x256xf32> to vector<1x256xf32>
    %56 = vector.broadcast %54 : vector<4x1xf32> to vector<4x256xf32>
    %57 = vector.broadcast %55 : vector<1x256xf32> to vector<4x256xf32>
    %58 = arith.mulf %56, %57 : vector<4x256xf32>
    %59 = arith.addf %53, %58 : vector<4x256xf32>
    %c0_27 = arith.constant 0 : index
    %c0_28 = arith.constant 0 : index
    %c0_29 = arith.constant 0 : index
    %60 = vector.load %arg6[%c0_27, %c0_28, %c0_29] : memref<1x4x256xf32, #tpu.memory_space<vmem>>, vector<1x4x256xf32>
    %61 = vector.shape_cast %60 : vector<1x4x256xf32> to vector<4x256xf32>
    %62 = vector.shape_cast %59 : vector<4x256xf32> to vector<1x4x256xf32>
    tpu.vector_store %arg6[%c0_27, %c0_28, %c0_29], %62 {strides = array<i32>} : memref<1x4x256xf32, #tpu.memory_space<vmem>>, vector<1x4x256xf32>,
    return
  }
  func.func @transform_0(%arg0: i32) -> (i32, i32, i32) {
    %c0_i32 = arith.constant 0 : i32
    %c0_i32_0 = arith.constant 0 : i32
    %c0_i32_1 = arith.constant 0 : i32
    return %arg0, %c0_i32, %c0_i32_0 : i32, i32, i32
  }
  func.func @transform_1(%arg0: i32) -> (i32, i32) {
    %c0_i32 = arith.constant 0 : i32
    %c0_i32_0 = arith.constant 0 : i32
    %c0_i32_1 = arith.constant 0 : i32
    return %c0_i32, %c0_i32_0 : i32, i32
  }
  func.func @transform_2(%arg0: i32) -> (i32, i32) {
    %c0_i32 = arith.constant 0 : i32
    %c0_i32_0 = arith.constant 0 : i32
    %c0_i32_1 = arith.constant 0 : i32
    return %c0_i32, %c0_i32_0 : i32, i32
  }
  func.func @transform_3(%arg0: i32) -> (i32, i32) {
    %c0_i32 = arith.constant 0 : i32
    %c0_i32_0 = arith.constant 0 : i32
    %c0_i32_1 = arith.constant 0 : i32
    return %c0_i32, %c0_i32_0 : i32, i32
  }
  func.func @transform_4(%arg0: i32) -> (i32, i32) {
    %c0_i32 = arith.constant 0 : i32
    %c0_i32_0 = arith.constant 0 : i32
    %c0_i32_1 = arith.constant 0 : i32
    return %c0_i32, %c0_i32_0 : i32, i32
  }
  func.func @transform_5(%arg0: i32) -> (i32, i32, i32) {
    %c0_i32 = arith.constant 0 : i32
    %c0_i32_0 = arith.constant 0 : i32
    %c0_i32_1 = arith.constant 0 : i32
    return %arg0, %c0_i32, %c0_i32_0 : i32, i32, i32
  }
}

</mosaic_0001>

<llo_original>
// kernel: tpu_custom_call.1
$region0: #{tpu_custom_call.1}
  #allocation0 [shape = 'u32[]', space=smem, size = 0x4, offset = 0x4, fixed_abs, tag = 'smem constant byte address 0x4 - core index']
  #allocation1 [shape = 'u32[72,128]{1,0:T(1,128)}', space=vmem, size = 0x9000, scoped, tag = 'internal scratch']
  #allocation2 [shape = 'f32[4,512]{1,0:T(4,128)}', space=vmem, size = 0x2000, scoped, tag = 'scratch operand']
  %s0 = inlined_call_operand.hbm [shape: f32[2,4,256], index: 0, kind: input, shape index: {}]
  %s1 = inlined_call_operand.hbm [shape: f32[3,258], index: 1, kind: input, shape index: {}]
  %s2 = inlined_call_operand.hbm [shape: f32[3,256], index: 2, kind: input, shape index: {}]
  %s3 = inlined_call_operand.vmem [shape: f32[4,4], index: 3, kind: input, shape index: {}]
  %s4 = inlined_call_operand.vmem [shape: f32[4,1], index: 4, kind: input, shape index: {}]
  %s5 = inlined_call_operand.hbm [shape: f32[2,4,256], index: 5, kind: output, shape index: {}]
  %s6 = sld [smem:[#allocation0]]
  $region65: #{tpu_custom_call.1} parent=0
    _
  %s8 = ssub.s32 1, %s6
  %s9 = scalar_select 0, %s8, %s6
  $region1: #{tpu_custom_call.1} parent=0
    #allocation3 [shape = 'u8[8192]{0}', space=vmem, size = 0x2000, scoped, tag = 'input window, operand 0']
    #allocation4 [shape = 's32[2]{0}', space=sflag, size = 0x8, scoped, tag = 'scoped memory for tpu_custom_call.1']
    #allocation5 [shape = 's32[2]{0}', space=sflag, size = 0x8, scoped, tag = 'scoped memory for tpu_custom_call.1']
    #allocation6 [shape = 'u8[6144]{0}', space=vmem, size = 0x1800, scoped, tag = 'input window, operand 1, single buffered']
    #allocation7 [shape = 's32[1]{0}', space=sflag, size = 0x4, scoped, tag = 'scoped memory for tpu_custom_call.1']
    #allocation8 [shape = 'u8[4096]{0}', space=vmem, size = 0x1000, scoped, tag = 'input window, operand 2, single buffered']
    #allocation9 [shape = 'u8[8192]{0}', space=vmem, size = 0x2000, scoped, tag = 'output window, operand 0']
    %10 = vsyncpa [#allocation4], 0
    %s11 = scalar_lea.sflag [#allocation4], 1
    %12 = vsyncpa %s11, 0
    %13 = vsyncpa [#allocation7], 0
    %14 = vsyncpa [#allocation5], 0
    %s15 = scalar_lea.sflag [#allocation5], 1
    %16 = vsyncpa %s15, 0
    loop: start=0, step=1, limit=4
    $region2: #{tpu_custom_call.1} parent=1 // loop_pre_header
      _
    $region3: #{tpu_custom_call.1} parent=1 // loop_header
      %s18 = sphi 0, %s22
      %p19 = scmp.ge.s32.totalorder %s18, 4
      %s28 = sphi 0, %s30
      %s31 = sphi 0, %s28
      %s32 = sphi 0, %s31
      %s48 = sphi 0, %s32
      %s52 = sphi 0, %s52
      %s54 = sphi 0, %s52
      %s55 = sphi 0, %s54
      %s69 = sphi 0, %s55
      %s73 = sphi 0, %s73
      %s75 = sphi 0, %s73
      %s76 = sphi 0, %s75
      %s90 = sphi 0, %s76
      %s94 = sphi 0, %s94
      %s96 = sphi 0, %s94
      %s97 = sphi 0, %s96
      %s111 = sphi 0, %s97
      %s115 = sphi 0, %s115
      %s117 = sphi 0, %s115
      %s118 = sphi 0, %s117
      %s132 = sphi 0, %s118
      %s138 = sphi 0, %s140
      %s141 = sphi 0, %s138
      %s142 = sphi 0, %s141
      %s158 = sphi 0, %s142
    $region4: #{tpu_custom_call.1} parent=1 // loop_header_branch
      %21 = sbr.rel (%p19) target = $region8
    $region5: #{tpu_custom_call.1} parent=1 // loop_body
      %s23 = ssub.s32 %s18, 1
      %s24 = ssub.s32 %s18, 2
      %s25 = sadd.s32 %s18, 1
      %s26 = ssub.s32 %s18, %s25
      %p27 = scmp.eq.s32.totalorder %s26, 0
      %s29 = sadd.s32 %s28, 1
      %s30 = scalar_select %p27, %s28, %s29
      %p33 = pneg %p27
      %p34 = scmp.eq.s32.totalorder %s18, 1
      %p35 = por %p33, %p34
      %p36 = scmp.ne.s32.totalorder %s28, %s31
      %p37 = scmp.eq.s32.totalorder %s18, 0
      %p38 = por %p36, %p37
      %p39 = scmp.ne.s32.totalorder %s28, %s31
      %p40 = scmp.eq.s32.totalorder %s23, 1
      %p41 = por %p39, %p40
      %p42 = scmp.ne.s32.totalorder %s31, %s32
      %p43 = scmp.eq.s32.totalorder %s23, 0
      %p44 = por %p42, %p43
      %p45 = scmp.ne.s32.totalorder %s31, %s32
      %p46 = scmp.eq.s32.totalorder %s24, 1
      %p47 = por %p45, %p46
      %p49 = scmp.ne.s32.totalorder %s32, %s48
      %p50 = scmp.eq.s32.totalorder %s24, 0
      %p51 = por %p49, %p50
      %s53 = sadd.s32 %s52, 1
      %p56 = scmp.eq.s32.totalorder %s18, 1
      %p57 = scmp.ne.s32.totalorder %s52, %s54
      %p58 = scmp.eq.s32.totalorder %s18, 0
      %p59 = por %p57, %p58
      %p60 = scmp.ne.s32.totalorder %s52, %s54
      %p61 = scmp.eq.s32.totalorder %s23, 1
      %p62 = por %p60, %p61
      %p63 = scmp.ne.s32.totalorder %s54, %s55
      %p64 = scmp.eq.s32.totalorder %s23, 0
      %p65 = por %p63, %p64
      %p66 = scmp.ne.s32.totalorder %s54, %s55
      %p67 = scmp.eq.s32.totalorder %s24, 1
      %p68 = por %p66, %p67
      %p70 = scmp.ne.s32.totalorder %s55, %s69
      %p71 = scmp.eq.s32.totalorder %s24, 0
      %p72 = por %p70, %p71
      %s74 = sadd.s32 %s73, 1
      %p77 = scmp.eq.s32.totalorder %s18, 1
      %p78 = scmp.ne.s32.totalorder %s73, %s75
      %p79 = scmp.eq.s32.totalorder %s18, 0
      %p80 = por %p78, %p79
      %p81 = scmp.ne.s32.totalorder %s73, %s75
      %p82 = scmp.eq.s32.totalorder %s23, 1
      %p83 = por %p81, %p82
      %p84 = scmp.ne.s32.totalorder %s75, %s76
      %p85 = scmp.eq.s32.totalorder %s23, 0
      %p86 = por %p84, %p85
      %p87 = scmp.ne.s32.totalorder %s75, %s76
      %p88 = scmp.eq.s32.totalorder %s24, 1
      %p89 = por %p87, %p88
      %p91 = scmp.ne.s32.totalorder %s76, %s90
      %p92 = scmp.eq.s32.totalorder %s24, 0
      %p93 = por %p91, %p92
      %s95 = sadd.s32 %s94, 1
      %p98 = scmp.eq.s32.totalorder %s18, 1
      %p99 = scmp.ne.s32.totalorder %s94, %s96
      %p100 = scmp.eq.s32.totalorder %s18, 0
      %p101 = por %p99, %p100
      %p102 = scmp.ne.s32.totalorder %s94, %s96
      %p103 = scmp.eq.s32.totalorder %s23, 1
      %p104 = por %p102, %p103
      %p105 = scmp.ne.s32.totalorder %s96, %s97
      %p106 = scmp.eq.s32.totalorder %s23, 0
      %p107 = por %p105, %p106
      %p108 = scmp.ne.s32.totalorder %s96, %s97
      %p109 = scmp.eq.s32.totalorder %s24, 1
      %p110 = por %p108, %p109
      %p112 = scmp.ne.s32.totalorder %s97, %s111
      %p113 = scmp.eq.s32.totalorder %s24, 0
      %p114 = por %p112, %p113
      %s116 = sadd.s32 %s115, 1
      %p119 = scmp.eq.s32.totalorder %s18, 1
      %p120 = scmp.ne.s32.totalorder %s115, %s117
      %p121 = scmp.eq.s32.totalorder %s18, 0
      %p122 = por %p120, %p121
      %p123 = scmp.ne.s32.totalorder %s115, %s117
      %p124 = scmp.eq.s32.totalorder %s23, 1
      %p125 = por %p123, %p124
      %p126 = scmp.ne.s32.totalorder %s117, %s118
      %p127 = scmp.eq.s32.totalorder %s23, 0
      %p128 = por %p126, %p127
      %p129 = scmp.ne.s32.totalorder %s117, %s118
      %p130 = scmp.eq.s32.totalorder %s24, 1
      %p131 = por %p129, %p130
      %p133 = scmp.ne.s32.totalorder %s118, %s132
      %p134 = scmp.eq.s32.totalorder %s24, 0
      %p135 = por %p133, %p134
      %s136 = ssub.s32 %s18, %s25
      %p137 = scmp.eq.s32.totalorder %s136, 0
      %s139 = sadd.s32 %s138, 1
      %s140 = scalar_select %p137, %s138, %s139
      %p143 = pneg %p137
      %p144 = scmp.eq.s32.totalorder %s18, 1
      %p145 = por %p143, %p144
      %p146 = scmp.ne.s32.totalorder %s138, %s141
      %p147 = scmp.eq.s32.totalorder %s18, 0
      %p148 = por %p146, %p147
      %p149 = scmp.ne.s32.totalorder %s138, %s141
      %p150 = scmp.eq.s32.totalorder %s23, 1
      %p151 = por %p149, %p150
      %p152 = scmp.ne.s32.totalorder %s141, %s142
      %p153 = scmp.eq.s32.totalorder %s23, 0
      %p154 = por %p152, %p153
      %p155 = scmp.ne.s32.totalorder %s141, %s142
      %p156 = scmp.eq.s32.totalorder %s24, 1
      %p157 = por %p155, %p156
      %p159 = scmp.ne.s32.totalorder %s142, %s158
      %p160 = scmp.eq.s32.totalorder %s24, 0
      %p161 = por %p159, %p160
      %p162 = scmp.le.s32.totalorder 1, %s18
      %p163 = scmp.lt.s32.totalorder %s18, 3
      %p164 = pnand %p162, %p163
      %p165 = pneg %p164
      // Predicated region
      $region9: #{tpu_custom_call.1} parent=5 // pred_check
        _
      $region10: #{tpu_custom_call.1} parent=5 // pred_check_branch
        %167 = sbr.rel (%p164) target = $region12
      $region11: #{tpu_custom_call.1} parent=5 // pred_region
        %s168 = ssub.s32 %s18, 1
        // Predicated region
        $region13: #{tpu_custom_call.1} parent=11 // pred_check
          %p169 = pneg %p65
        $region14: #{tpu_custom_call.1} parent=11 // pred_check_branch
          %171 = sbr.rel (%p169) target = $region16
        $region15: #{tpu_custom_call.1} parent=11 // pred_region
          %173 = vsyncadd [#allocation7], 0
          %s175 = sshll.u32 %s1, 4
          %s176 = int_to_ptr.hbm [resolvable:$true] %s175
          %s177 = sshll.u32 [#allocation6], 4
          %s178 = int_to_ptr.vmem [resolvable:$true] %s177
          %180 = dma.hbm_to_vmem [thread:$0]  %s176, 192, %s178, [#allocation7]
        $region16: #{tpu_custom_call.1} parent=11 // pred_fallthru
          _
        // Predicated region
        $region17: #{tpu_custom_call.1} parent=11 // pred_check
          %p181 = pneg %p86
        $region18: #{tpu_custom_call.1} parent=11 // pred_check_branch
          %183 = sbr.rel (%p181) target = $region20
        $region19: #{tpu_custom_call.1} parent=11 // pred_region
          %185 = vsyncadd [#allocation7], 0
          %s187 = sshll.u32 %s2, 4
          %s188 = int_to_ptr.hbm [resolvable:$true] %s187
          %s189 = sshll.u32 [#allocation8], 4
          %s190 = int_to_ptr.vmem [resolvable:$true] %s189
          %192 = dma.hbm_to_vmem [thread:$0]  %s188, 128, %s190, [#allocation7]
        $region20: #{tpu_custom_call.1} parent=11 // pred_fallthru
          _
        // Predicated region
        $region21: #{tpu_custom_call.1} parent=11 // pred_check
          %p193 = pneg %p107
        $region22: #{tpu_custom_call.1} parent=11 // pred_check_branch
          %195 = sbr.rel (%p193) target = $region24
        $region23: #{tpu_custom_call.1} parent=11 // pred_region
          _
        $region24: #{tpu_custom_call.1} parent=11 // pred_fallthru
          _
        // Predicated region
        $region25: #{tpu_custom_call.1} parent=11 // pred_check
          %p196 = pneg %p128
        $region26: #{tpu_custom_call.1} parent=11 // pred_check_branch
          %198 = sbr.rel (%p196) target = $region28
        $region27: #{tpu_custom_call.1} parent=11 // pred_region
          _
        $region28: #{tpu_custom_call.1} parent=11 // pred_fallthru
          _
      $region12: #{tpu_custom_call.1} parent=5 // pred_fallthru
        _
      %p199 = scmp.lt.s32.totalorder %s18, 2
      // Predicated region
      $region29: #{tpu_custom_call.1} parent=5 // pred_check
        %p200 = pneg %p199
      $region30: #{tpu_custom_call.1} parent=5 // pred_check_branch
        %202 = sbr.rel (%p200) target = $region32
      $region31: #{tpu_custom_call.1} parent=5 // pred_region
        // Predicated region
        $region33: #{tpu_custom_call.1} parent=31 // pred_check
          %p203 = pneg %p38
        $region34: #{tpu_custom_call.1} parent=31 // pred_check_branch
          %205 = sbr.rel (%p203) target = $region36
        $region35: #{tpu_custom_call.1} parent=31 // pred_region
          %s206 = sand.u32 %s28, 1
          %s207 = scalar_lea.sflag [#allocation4], %s206
          %s208 = sand.u32 %s28, 1
          %s209 = smul.addr %s208, 8
          %s210 = scalar_lea.vmem [#allocation3], %s209
          %212 = vsyncadd %s207, 0
          %s213 = smul.addr %s18, 2
          %s214 = smul.addr %s213, 4
          %s215 = scalar_lea.hbm %s0, %s214
          %s217 = sshll.u32 %s215, 4
          %s218 = int_to_ptr.hbm [resolvable:$true] %s217
          %s219 = sshll.u32 %s210, 4
          %s220 = int_to_ptr.vmem [resolvable:$true] %s219
          %222 = dma.hbm_to_vmem [thread:$0]  %s218, 128, %s220, %s207
        $region36: #{tpu_custom_call.1} parent=31 // pred_fallthru
          _
      $region32: #{tpu_custom_call.1} parent=5 // pred_fallthru
        _
      %p223 = scmp.le.s32.totalorder 1, %s18
      %p224 = scmp.lt.s32.totalorder %s18, 3
      %p225 = pnand %p223, %p224
      %p226 = pneg %p225
      // Predicated region
      $region37: #{tpu_custom_call.1} parent=5 // pred_check
        _
      $region38: #{tpu_custom_call.1} parent=5 // pred_check_branch
        %228 = sbr.rel (%p225) target = $region40
      $region39: #{tpu_custom_call.1} parent=5 // pred_region
        %s229 = ssub.s32 %s18, 1
        %s230 = sand.u32 %s31, 1
        %s231 = scalar_lea.sflag [#allocation4], %s230
        %s232 = sand.u32 %s31, 1
        %s233 = smul.addr %s232, 8
        %s234 = scalar_lea.vmem [#allocation3], %s233
        // Predicated region
        $region41: #{tpu_custom_call.1} parent=39 // pred_check
          %p235 = pneg %p44
        $region42: #{tpu_custom_call.1} parent=39 // pred_check_branch
          %237 = sbr.rel (%p235) target = $region44
        $region43: #{tpu_custom_call.1} parent=39 // pred_region
          %239 = dma.done %s231, 128
        $region44: #{tpu_custom_call.1} parent=39 // pred_fallthru
          _
        // Predicated region
        $region45: #{tpu_custom_call.1} parent=39 // pred_check
          %p240 = pneg %p65
        $region46: #{tpu_custom_call.1} parent=39 // pred_check_branch
          %242 = sbr.rel (%p240) target = $region48
        $region47: #{tpu_custom_call.1} parent=39 // pred_region
          %244 = dma.done [#allocation7], 192
        $region48: #{tpu_custom_call.1} parent=39 // pred_fallthru
          _
        // Predicated region
        $region49: #{tpu_custom_call.1} parent=39 // pred_check
          %p245 = pneg %p86
        $region50: #{tpu_custom_call.1} parent=39 // pred_check_branch
          %247 = sbr.rel (%p245) target = $region52
        $region51: #{tpu_custom_call.1} parent=39 // pred_region
          %249 = dma.done [#allocation7], 128
        $region52: #{tpu_custom_call.1} parent=39 // pred_fallthru
          _
        %s250 = sand.u32 %s31, 1
        %s251 = scalar_lea.sflag [#allocation4], %s250
        %s252 = sand.u32 %s31, 1
        %s253 = smul.addr %s252, 8
        %s254 = scalar_lea.vmem [#allocation3], %s253
        %p255 = pneg %p44
        %p256 = pneg %p41
        %p257 = pneg %p65
        %p258 = pneg %p62
        %p259 = pneg %p86
        %p260 = pneg %p83
        %p261 = pneg %p107
        %p262 = pneg %p104
        %p263 = pneg %p128
        %p264 = pneg %p125
        %p265 = pneg %p154
        %p266 = pneg %p151
        %s267 = sand.u32 %s141, 1
        %s268 = scalar_lea.sflag [#allocation5], %s267
        %s269 = sand.u32 %s141, 1
        %s270 = smul.addr %s269, 8
        %s271 = scalar_lea.vmem [#allocation9], %s270
        %v272 = vld [vmem:[%s234] sm:$0xff]
        %273 = vst [vmem:[#allocation2] sm:$0xff] 0.0
        %274 = vst [vmem:[#allocation2 + $0x8] sm:$0xff] 0.0
        %275 = vst [vmem:[#allocation2 + $0x4] sm:$0xff] %v272
        %v276 = vld [vmem:[#allocation6] ss:$4 sm:$0x7]
        %v277 = vld [vmem:[#allocation2] sm:$0xff]
        %v278 = vld [vmem:[#allocation2 + $0x8] sm:$0xf]
        %v280 = vperm.slane %v276, 0
        %v281 = vperm.slane %v276, 1
        %v282 = vperm.slane %v276, 2
        %288 = vst [vmem:[#allocation1] ss:$2 sm:$0xff] %v277
        %s289 = scalar_lea.vmem [#allocation1], 16
        %290 = vst [vmem:[%s289] ss:$2 sm:$0xff] %v278
        %v291 = vld.sshfl [vmem:[#allocation1] sm:$0xff pattern:$0x75316420]
        %v292 = vld.sshfl [vmem:[#allocation1 + $0x8] sm:$0xff pattern:$0x75316420]
        %v293 = vld.sshfl [vmem:[#allocation1 + $0x10] sm:$0xff pattern:$0x75316420]
        %294 = vrot.lane.b32.xlu0 %v291, 17
        %v295 = vpop.permute.xlu0 %294
        %296 = vrot.lane.b32.xlu0 %v292, 17
        %v297 = vpop.permute.xlu0 %296
        %298 = vrot.lane.b32.xlu0 %v293, 17
        %v299 = vpop.permute.xlu0 %298
        %vm300 = vcmask 138240
        %v301 = vsel %vm300, %v295, %v297
        %v302 = vsel %vm300, %v297, %v299
        %v306 = vmul.f32 %v280, %v301
        %v307 = vmul.f32 %v281, %v302
        %v308 = vmul.f32 %v282, %v299
        %s309 = scalar_lea.vmem [#allocation6], 1
        %v310 = vld [vmem:[%s309] ss:$4 sm:$0x7]
        %v311 = vld [vmem:[#allocation2] sm:$0xff]
        %v312 = vld [vmem:[#allocation2 + $0x8] sm:$0xff]
        %v314 = vperm.slane %v310, 0
        %v315 = vperm.slane %v310, 1
        %v316 = vperm.slane %v310, 2
        %322 = vst [vmem:[#allocation1] ss:$2 sm:$0xff] %v311
        %s323 = scalar_lea.vmem [#allocation1], 16
        %324 = vst [vmem:[%s323] ss:$2 sm:$0xff] %v312
        %v325 = vld.sshfl [vmem:[#allocation1] sm:$0xff pattern:$0x75316420]
        %v326 = vld.sshfl [vmem:[#allocation1 + $0x8] sm:$0xff pattern:$0x75316420]
        %v327 = vld.sshfl [vmem:[#allocation1 + $0x10] sm:$0xff pattern:$0x75316420]
        %v328 = vld.sshfl [vmem:[#allocation1 + $0x18] sm:$0xff pattern:$0x75316420]
        %329 = vrot.lane.b32.xlu0 %v325, 1
        %v330 = vpop.permute.xlu0 %329
        %331 = vrot.lane.b32.xlu0 %v326, 1
        %v332 = vpop.permute.xlu0 %331
        %333 = vrot.lane.b32.xlu0 %v327, 1
        %v334 = vpop.permute.xlu0 %333
        %335 = vrot.lane.b32.xlu0 %v328, 1
        %v336 = vpop.permute.xlu0 %335
        %vm337 = vcmask 7168
        %v338 = vsel %vm337, %v330, %v332
        %v339 = vsel %vm337, %v332, %v334
        %v340 = vsel %vm337, %v334, %v336
        %v344 = vmul.f32 %v314, %v338
        %v345 = vmul.f32 %v315, %v339
        %v346 = vmul.f32 %v316, %v340
        %v347 = vadd.f32 %v306, %v344
        %v348 = vadd.f32 %v307, %v345
        %v349 = vadd.f32 %v308, %v346
        %s350 = scalar_lea.vmem [#allocation6], 2
        %v351 = vld [vmem:[%s350] ss:$4 sm:$0x7]
        %v352 = vld [vmem:[#allocation2 + $0x4] sm:$0xff]
        %v353 = vld [vmem:[#allocation2 + $0xc] sm:$0xf]
        %v355 = vperm.slane %v351, 0
        %v356 = vperm.slane %v351, 1
        %v357 = vperm.slane %v351, 2
        %363 = vst [vmem:[#allocation1] ss:$2 sm:$0xff] %v352
        %s364 = scalar_lea.vmem [#allocation1], 16
        %365 = vst [vmem:[%s364] ss:$2 sm:$0xff] %v353
        %v366 = vld.sshfl [vmem:[#allocation1] sm:$0xff pattern:$0x75316420]
        %v367 = vld.sshfl [vmem:[#allocation1 + $0x8] sm:$0xff pattern:$0x75316420]
        %v368 = vld.sshfl [vmem:[#allocation1 + $0x10] sm:$0xff pattern:$0x75316420]
        %369 = vrot.lane.b32.xlu0 %v366, 113
        %v370 = vpop.permute.xlu0 %369
        %371 = vrot.lane.b32.xlu0 %v367, 113
        %v372 = vpop.permute.xlu0 %371
        %373 = vrot.lane.b32.xlu0 %v368, 113
        %v374 = vpop.permute.xlu0 %373
        %vm375 = vcmask 924672
        %v376 = vsel %vm375, %v370, %v372
        %v377 = vsel %vm375, %v372, %v374
        %v381 = vmul.f32 %v355, %v376
        %v382 = vmul.f32 %v356, %v377
        %v383 = vmul.f32 %v357, %v374
        %v384 = vadd.f32 %v347, %v381
        %v385 = vadd.f32 %v348, %v382
        %v386 = vadd.f32 %v349, %v383
        %v387 = vld [vmem:[#allocation8] ss:$4 sm:$0x3]
        %v389 = vperm.slane %v387, 0
        %v390 = vperm.slane %v387, 1
        %v393 = vmul.f32 %v389, %v384
        %v394 = vmul.f32 %v390, %v385
        %s395 = scalar_lea.vmem [#allocation8], 1
        %v396 = vld [vmem:[%s395] ss:$4 sm:$0x3]
        %v398 = vperm.slane %v396, 0
        %v399 = vperm.slane %v396, 1
        %405 = vrot.lane.b32.xlu0 %v384, 127
        %v406 = vpop.permute.xlu0 %405
        %407 = vrot.lane.b32.xlu0 %v385, 127
        %v408 = vpop.permute.xlu0 %407
        %409 = vrot.lane.b32.xlu0 %v386, 127
        %v410 = vpop.permute.xlu0 %409
        %vm411 = vcmask 1039360
        %v412 = vsel %vm411, %v406, %v408
        %v413 = vsel %vm411, %v408, %v410
        %v416 = vmul.f32 %v398, %v412
        %v417 = vmul.f32 %v399, %v413
        %v418 = vadd.f32 %v393, %v416
        %v419 = vadd.f32 %v394, %v417
        %s420 = scalar_lea.vmem [#allocation8], 2
        %v421 = vld [vmem:[%s420] ss:$4 sm:$0x3]
        %v423 = vperm.slane %v421, 0
        %v424 = vperm.slane %v421, 1
        %427 = vrot.lane.b32.xlu0 %v384, 126
        %v428 = vpop.permute.xlu0 %427
        %429 = vrot.lane.b32.xlu0 %v385, 126
        %v430 = vpop.permute.xlu0 %429
        %431 = vrot.lane.b32.xlu0 %v386, 126
        %v432 = vpop.permute.xlu0 %431
        %vm433 = vcmask 1031168
        %v434 = vsel %vm433, %v428, %v430
        %v435 = vsel %vm433, %v430, %v432
        %v438 = vmul.f32 %v423, %v434
        %v439 = vmul.f32 %v424, %v435
        %v440 = vadd.f32 %v418, %v438
        %v441 = vadd.f32 %v419, %v439
        %v442 = vld [vmem:[%s4] sm:$0xf]
        %444 = vset.pattern.permute.xlu0 0
        %445 = vperm.xlu0 %444, %v442
        %v446 = vpop.permute.xlu0 %445
        %v448 = vunpack.c.l.s4 839922192
        %v449 = vunpack.c.0.s8 %v448
        %v450 = vperm.slane %v446, %v449
        %v452 = vadd.f32 %v272, %v450
        %v453 = vld [vmem:[%s3] sm:$0xf]
        %455 = vset.pattern.permute.xlu0 0
        %456 = vperm.xlu0 %455, %v453
        %v457 = vpop.permute.xlu0 %456
        %v459 = vperm.slane %v440, 0
        %v460 = vperm.slane %v441, 0
        %v461 = vmul.f32 %v457, %v459
        %v462 = vmul.f32 %v457, %v460
        %v465 = vrot.slane %v462, 4
        %vm466 = vcmask 1043456
        %v467 = vsel %vm466, %v461, %v465
        %v469 = vadd.f32 %v452, %v467
        %470 = vset.pattern.permute.xlu0 1
        %471 = vperm.xlu0 %470, %v453
        %v472 = vpop.permute.xlu0 %471
        %v474 = vperm.slane %v440, 1
        %v475 = vperm.slane %v441, 1
        %v476 = vmul.f32 %v472, %v474
        %v477 = vmul.f32 %v472, %v475
        %v480 = vrot.slane %v477, 4
        %v481 = vsel %vm466, %v476, %v480
        %v483 = vadd.f32 %v469, %v481
        %484 = vset.pattern.permute.xlu0 2
        %485 = vperm.xlu0 %484, %v453
        %v486 = vpop.permute.xlu0 %485
        %v488 = vperm.slane %v440, 2
        %v489 = vperm.slane %v441, 2
        %v490 = vmul.f32 %v486, %v488
        %v491 = vmul.f32 %v486, %v489
        %v494 = vrot.slane %v491, 4
        %v495 = vsel %vm466, %v490, %v494
        %v497 = vadd.f32 %v483, %v495
        %498 = vset.pattern.permute.xlu0 3
        %499 = vperm.xlu0 %498, %v453
        %v500 = vpop.permute.xlu0 %499
        %v502 = vperm.slane %v440, 3
        %v503 = vperm.slane %v441, 3
        %v504 = vmul.f32 %v500, %v502
        %v505 = vmul.f32 %v500, %v503
        %v508 = vrot.slane %v505, 4
        %v509 = vsel %vm466, %v504, %v508
        %v511 = vadd.f32 %v497, %v509
        %512 = vst [vmem:[%s271] sm:$0xff] %v511
        %s513 = sand.u32 %s141, 1
        %s514 = scalar_lea.sflag [#allocation5], %s513
        %s515 = sand.u32 %s141, 1
        %s516 = smul.addr %s515, 8
        %s517 = scalar_lea.vmem [#allocation9], %s516
        // Predicated region
        $region53: #{tpu_custom_call.1} parent=39 // pred_check
          %p518 = pneg %p151
        $region54: #{tpu_custom_call.1} parent=39 // pred_check_branch
          %520 = sbr.rel (%p518) target = $region56
        $region55: #{tpu_custom_call.1} parent=39 // pred_region
          %522 = vsyncadd %s514, 0
          %s523 = smul.addr %s23, 2
          %s524 = smul.addr %s523, 4
          %s525 = scalar_lea.hbm %s5, %s524
          %s527 = sshll.u32 %s517, 4
          %s528 = int_to_ptr.vmem [resolvable:$true] %s527
          %s529 = sshll.u32 %s525, 4
          %s530 = int_to_ptr.hbm [resolvable:$true] %s529
          %532 = dma.vmem_to_hbm [thread:$0]  %s528, 128, %s530, %s514
        $region56: #{tpu_custom_call.1} parent=39 // pred_fallthru
          _
      $region40: #{tpu_custom_call.1} parent=5 // pred_fallthru
        _
      %p533 = scmp.le.s32.totalorder 2, %s18
      // Predicated region
      $region57: #{tpu_custom_call.1} parent=5 // pred_check
        %p534 = pneg %p533
      $region58: #{tpu_custom_call.1} parent=5 // pred_check_branch
        %536 = sbr.rel (%p534) target = $region60
      $region59: #{tpu_custom_call.1} parent=5 // pred_region
        %s537 = ssub.s32 %s18, 2
        // Predicated region
        $region61: #{tpu_custom_call.1} parent=59 // pred_check
          %p538 = pneg %p157
        $region62: #{tpu_custom_call.1} parent=59 // pred_check_branch
          %540 = sbr.rel (%p538) target = $region64
        $region63: #{tpu_custom_call.1} parent=59 // pred_region
          %s541 = sand.u32 %s142, 1
          %s542 = scalar_lea.sflag [#allocation5], %s541
          %s543 = sand.u32 %s142, 1
          %s544 = smul.addr %s543, 8
          %s545 = scalar_lea.vmem [#allocation9], %s544
          %547 = dma.done %s542, 128
        $region64: #{tpu_custom_call.1} parent=59 // pred_fallthru
          _
      $region60: #{tpu_custom_call.1} parent=5 // pred_fallthru
        _
    $region6: #{tpu_custom_call.1} parent=1 // loop_footer
      %s22 = sadd.s32 1, %s18
    $region7: #{tpu_custom_call.1} parent=1 // loop_footer_branch
      %17 = sbr.rel target = $region3
    $region8: #{tpu_custom_call.1} parent=1 // loop_exit
      _
    %548 = vsyncpa [#allocation4], 1
    %s549 = scalar_lea.sflag [#allocation4], 1
    %550 = vsyncpa %s549, 1
    %551 = vsyncpa [#allocation7], 1
    %552 = vsyncpa [#allocation5], 1
    %s553 = scalar_lea.sflag [#allocation5], 1
    %554 = vsyncpa %s553, 1

</llo_original>
